<compile_context>
chip_gen: v6e
topology: v6e:2x2x1
jax: 0.10.0
libtpu: 0.0.40
codegen_flags: <defaults>
</compile_context>

<pallas_src>
import math

import jax
import jax.numpy as jnp
from jax.experimental import pallas as pl
from jax.experimental.pallas import tpu as pltpu


def _round_up(x, m):
    return ((x + m - 1) // m) * m


def _vmem_capacity_bytes():
    try:
        info = pltpu.get_tpu_info()
        cap = getattr(info, "vmem_capacity_bytes", None)
        if cap:
            return int(cap)
    except Exception:
        pass
    return 64 << 20  # conservative (v7x-sized) fallback


def _siren_kernel(x_ref, w_ref, b_ref, o_ref):
    # x_ref: (TB, IN)      input dtype; cast to weight dtype for the MXU
    # w_ref: (IN, OUT_P)   (w0 * W)^T, bf16 by default, zero-padded columns
    # b_ref: (1, OUT_P)    w0 * b, f32
    # o_ref: (TB, OUT_P)
    x = x_ref[...].astype(w_ref.dtype)
    y = jnp.dot(x, w_ref[...], preferred_element_type=jnp.float32)
    o_ref[...] = jnp.sin(y + b_ref[...]).astype(o_ref.dtype)


def prepare_siren_params(weight, bias, w0=80.0, param_dtype=jnp.bfloat16):
    """One-time parameter prep (do at init, not per forward call).

    weight: (out_features, in_features)  -- PyTorch nn.Linear layout
    bias:   (out_features,)
    Returns (w_prep, b_prep, out_features) where
      w_prep: (in_features, out_pad) = (w0 * weight).T, lane dim padded to 128,
              cast to param_dtype (bf16 default -> half the W DMA bytes).
      b_prep: (1, out_pad) = w0 * bias in f32 (added post-accumulation).
    """
    out_f, in_f = weight.shape
    out_p = _round_up(out_f, 128)
    w_t = (w0 * weight.astype(jnp.float32)).T  # (in_f, out_f)
    w_prep = jnp.zeros((in_f, out_p), param_dtype).at[:, :out_f].set(
        w_t.astype(param_dtype))
    b_prep = jnp.zeros((1, out_p), jnp.float32).at[0, :out_f].set(
        (w0 * bias).astype(jnp.float32))
    return w_prep, b_prep, out_f


def _choose_tile_b(b8, row_bytes, tile_budget):
    """Largest 8-multiple row tile that (a) fits the VMEM budget, (b) leaves
    >=2 grid steps when the batch allows (v7x dual-TC), (c) divides b8 so no
    batch padding pass is needed."""
    cap = max(8, min(2048, (tile_budget // max(row_bytes, 1)) // 8 * 8))
    if b8 >= 16:
        cap = min(cap, _round_up(pl.cdiv(b8, 2), 8))
    cap = max(cap, 8)
    m = b8 // 8
    best = 1
    d = 1
    while d * d <= m:
        if m % d == 0:
            for q in (d, m // d):
                if 8 * q <= cap and q > best:
                    best = q
        d += 1
    return 8 * best


def siren_layer_prepared(x, w_prep, b_prep, out_features, tile_b=None,
                         out_dtype=None):
    """Computes sin(x @ w_prep + b_prep)[:, :out_features] with prepared params."""
    B, in_f = x.shape
    in_w, out_p = w_prep.shape
    assert in_f == in_w, (in_f, in_w)
    out_dtype = x.dtype if out_dtype is None else out_dtype

    x_item = jnp.dtype(x.dtype).itemsize
    w_item = jnp.dtype(w_prep.dtype).itemsize
    o_item = jnp.dtype(out_dtype).itemsize

    b8 = _round_up(max(B, 1), 8)
    vmem_cap = _vmem_capacity_bytes()
    w_bytes = in_f * out_p * w_item + out_p * 4           # single-buffered W + b
    row_bytes = 2 * (in_f * x_item + out_p * o_item)      # double-buffered x/out
    tile_budget = max(int(0.75 * vmem_cap) - w_bytes, 1 << 20)

    if tile_b is None:
        tile_b = _choose_tile_b(b8, row_bytes, tile_budget)
    tile_b = _round_up(tile_b, 8)
    b_rows = _round_up(b8, tile_b)

    # Only materialize a padded x when B is ragged w.r.t. the chosen tile;
    # the common aligned case streams x straight from its original buffer.
    if b_rows != B:
        x_in = jnp.zeros((b_rows, in_f), x.dtype).at[:B, :].set(x)
    else:
        x_in = x

    grid = (b_rows // tile_b,)

    vmem_est = w_bytes + tile_b * row_bytes
    vmem_limit = max(16 << 20,
                     min(int(1.25 * vmem_est) + (2 << 20),
                         int(0.85 * vmem_cap)))

    cost = pl.CostEstimate(
        flops=2 * b_rows * in_f * out_p,
        transcendentals=b_rows * out_p,
        bytes_accessed=(b_rows * in_f * x_item + in_f * out_p * w_item
                        + out_p * 4 + b_rows * out_p * o_item),
    )

    out = pl.pallas_call(
        _siren_kernel,
        out_shape=jax.ShapeDtypeStruct((b_rows, out_p), out_dtype),
        grid_spec=pltpu.PrefetchScalarGridSpec(
            num_scalar_prefetch=0,
            grid=grid,
            in_specs=[
                # x tile: last dim == full array dim -> legal without 128 pad.
                pl.BlockSpec((tile_b, in_f), lambda i: (i, 0)),
                # Grid-invariant weight/bias stay VMEM-resident, single buffer.
                pl.BlockSpec((in_f, out_p), lambda i: (0, 0),
                             pipeline_mode=pl.Buffered(1)),
                pl.BlockSpec((1, out_p), lambda i: (0, 0),
                             pipeline_mode=pl.Buffered(1)),
            ],
            out_specs=pl.BlockSpec((tile_b, out_p), lambda i: (i, 0)),
        ),
        compiler_params=pltpu.CompilerParams(
            dimension_semantics=("parallel",),
            vmem_limit_bytes=vmem_limit,
        ),
        cost_estimate=cost,
    )(x_in, w_prep, b_prep)

    if b_rows != B or out_features != out_p:
        out = out[:B, :out_features]
    return out


def siren_layer(x, weight, bias, w0=80.0, tile_b=None):
    """Convenience wrapper matching SIRENLayer.forward: sin(w0*(x @ W^T + b)).

    In a real model, call prepare_siren_params once and reuse the result.
    """
    w_prep, b_prep, out_f = prepare_siren_params(weight, bias, w0)
    return siren_layer_prepared(x, w_prep, b_prep, out_f, tile_b=tile_b)


def init_siren_params(key, in_features, out_features, is_first=False, w0=80.0):
    """Deterministic SIREN init matching the PyTorch module."""
    kw, kb = jax.random.split(key)
    if is_first:
        bound = 1.0 / in_features
    else:
        bound = math.sqrt(6.0 / in_features) / w0
    weight = jax.random.uniform(
        kw, (out_features, in_features), jnp.float32, minval=-bound, maxval=bound
    )
    # nn.Linear default bias init: U(-1/sqrt(in_features), 1/sqrt(in_features))
    b_bound = 1.0 / math.sqrt(in_features)
    bias = jax.random.uniform(
        kb, (out_features,), jnp.float32, minval=-b_bound, maxval=b_bound
    )
    return weight, bias


if __name__ == "__main__":
    key = jax.random.PRNGKey(0)
    k_x, k_p = jax.random.split(key)

    B, in_features, out_features = 8, 32, 64
    w0 = 80.0

    x = jax.random.uniform(k_x, (B, in_features), jnp.float32,
                           minval=-1.0, maxval=1.0)
    weight, bias = init_siren_params(k_p, in_features, out_features,
                                     is_first=True, w0=w0)

    # Prepare params once (transpose + w0 folding + bf16 + lane padding), run.
    w_prep, b_prep, out_f = prepare_siren_params(weight, bias, w0)
    out = siren_layer_prepared(x, w_prep, b_prep, out_f)
    out = jax.block_until_ready(out)
    assert out.shape == (B, out_features)

    # Tight check vs a reference built from the SAME bf16-rounded operands
    # (isolates kernel correctness from the intended bf16 input rounding).
    w_bf = (w0 * weight).T.astype(jnp.bfloat16).astype(jnp.float32)
    x_bf = x.astype(jnp.bfloat16).astype(jnp.float32)
    ref_bf = jnp.sin(x_bf @ w_bf + w0 * bias)
    assert jnp.allclose(out, ref_bf, atol=2e-3, rtol=2e-3), (
        float(jnp.max(jnp.abs(out - ref_bf))))

    # Loose check vs the exact f32 formulation of SIRENLayer.forward
    # (w0-amplified angle picks up ~1e-2-level abs error from bf16 rounding).
    ref = jnp.sin(w0 * (x @ weight.T + bias))
    assert jnp.allclose(out, ref, atol=1e-1, rtol=0.0), (
        float(jnp.max(jnp.abs(out - ref))))

    print("KERNEL_OK")
</pallas_src>

<mosaic_0001>
module attributes {stable_mosaic.version = 11 : i64} {
  func.func @_siren_kernel(%arg0: i32, %arg1: memref<8x32xf32, #tpu.memory_space<vmem>>, %arg2: memref<32x128xbf16, #tpu.memory_space<vmem>>, %arg3: memref<1x128xf32, #tpu.memory_space<vmem>>, %arg4: memref<8x128xf32, #tpu.memory_space<vmem>>) attributes {dimension_semantics = [#tpu.dimension_semantics<parallel>], iteration_bounds = array<i64: 1>, scalar_prefetch = 0 : i64, scratch_operands = 0 : i64, tpu.core_type = #tpu.core_type<tc>, window_params = [{transform_indices = @transform_0, window_bounds = array<i64: 8, 32>}, {pipeline_mode = #tpu.pipeline_mode<synchronous>, transform_indices = @transform_1, window_bounds = array<i64: 32, 128>}, {pipeline_mode = #tpu.pipeline_mode<synchronous>, transform_indices = @transform_2, window_bounds = array<i64: 1, 128>}, {transform_indices = @transform_3, window_bounds = array<i64: 8, 128>}]} {
    %c0 = arith.constant 0 : index
    %c0_0 = arith.constant 0 : index
    %0 = vector.load %arg1[%c0, %c0_0] : memref<8x32xf32, #tpu.memory_space<vmem>>, vector<8x32xf32>
    %1 = arith.truncf %0 : vector<8x32xf32> to vector<8x32xbf16>
    %c0_1 = arith.constant 0 : index
    %c0_2 = arith.constant 0 : index
    %2 = vector.load %arg2[%c0_1, %c0_2] : memref<32x128xbf16, #tpu.memory_space<vmem>>, vector<32x128xbf16>
    %cst = arith.constant dense<0.000000e+00> : vector<8x128xf32>
    %3 = tpu.matmul %1, %2, %cst {dimension_numbers = #tpu.dot_dimension_numbers<[1], [0], [0], [1], [0, 0, 1, 1], [], []>} : vector<8x32xbf16>, vector<32x128xbf16>, vector<8x128xf32> -> vector<8x128xf32>
    %c0_3 = arith.constant 0 : index
    %c0_4 = arith.constant 0 : index
    %4 = vector.load %arg3[%c0_3, %c0_4] : memref<1x128xf32, #tpu.memory_space<vmem>>, vector<1x128xf32>
    %5 = vector.broadcast %4 : vector<1x128xf32> to vector<8x128xf32>
    %6 = arith.addf %3, %5 : vector<8x128xf32>
    %7 = math.sin %6 : vector<8x128xf32>
    %c0_5 = arith.constant 0 : index
    %c0_6 = arith.constant 0 : index
    %8 = vector.load %arg4[%c0_5, %c0_6] : memref<8x128xf32, #tpu.memory_space<vmem>>, vector<8x128xf32>
    tpu.vector_store %arg4[%c0_5, %c0_6], %7 {strides = array<i32>} : memref<8x128xf32, #tpu.memory_space<vmem>>, vector<8x128xf32>,
    return
  }
  func.func @transform_0(%arg0: i32) -> (i32, i32) {
    %c0_i32 = arith.constant 0 : i32
    %c0_i32_0 = arith.constant 0 : i32
    return %arg0, %c0_i32 : i32, i32
  }
  func.func @transform_1(%arg0: i32) -> (i32, i32) {
    %c0_i32 = arith.constant 0 : i32
    %c0_i32_0 = arith.constant 0 : i32
    %c0_i32_1 = arith.constant 0 : i32
    return %c0_i32, %c0_i32_0 : i32, i32
  }
  func.func @transform_2(%arg0: i32) -> (i32, i32) {
    %c0_i32 = arith.constant 0 : i32
    %c0_i32_0 = arith.constant 0 : i32
    %c0_i32_1 = arith.constant 0 : i32
    return %c0_i32, %c0_i32_0 : i32, i32
  }
  func.func @transform_3(%arg0: i32) -> (i32, i32) {
    %c0_i32 = arith.constant 0 : i32
    %c0_i32_0 = arith.constant 0 : i32
    return %arg0, %c0_i32 : i32, i32
  }
}

</mosaic_0001>

<llo_original>
// kernel: tpu_custom_call.1
$region0: #{tpu_custom_call.1}
  #allocation0 [shape = 'u32[]', space=smem, size = 0x4, offset = 0x4, fixed_abs, tag = 'smem constant byte address 0x4 - core index']
  #allocation1 [shape = 'u32[144,128]{1,0:T(1,128)}', space=vmem, size = 0x12000, scoped, tag = 'internal scratch']
  %s0 = inlined_call_operand.hbm [shape: f32[8,32], index: 0, kind: input, shape index: {}]
  %s1 = inlined_call_operand.hbm [shape: bf16[32,128], index: 1, kind: input, shape index: {}]
  %s2 = inlined_call_operand.vmem [shape: f32[1,128], index: 2, kind: input, shape index: {}]
  %s3 = inlined_call_operand.hbm [shape: f32[8,128], index: 3, kind: output, shape index: {}]
  %s4 = sld [smem:[#allocation0]]
  $region30: #{tpu_custom_call.1} parent=0
    _
  %s6 = ssub.s32 1, %s4
  %s7 = scalar_select 0, %s6, %s4
  $region1: #{tpu_custom_call.1} parent=0
    #allocation2 [shape = 'u8[4096]{0}', space=vmem, size = 0x1000, scoped, tag = 'input window, operand 0, single buffered']
    #allocation3 [shape = 's32[1]{0}', space=sflag, size = 0x4, scoped, tag = 'scoped memory for tpu_custom_call.1']
    #allocation4 [shape = 's32[1]{0}', space=sflag, size = 0x4, scoped, tag = 'scoped memory for tpu_custom_call.1']
    #allocation5 [shape = 'u8[8192]{0}', space=vmem, size = 0x2000, scoped, tag = 'input window, operand 1, single buffered']
    #allocation6 [shape = 's32[1]{0}', space=sflag, size = 0x4, scoped, tag = 'scoped memory for tpu_custom_call.1']
    #allocation7 [shape = 'u8[4096]{0}', space=vmem, size = 0x1000, scoped, tag = 'output window, operand 0, single buffered']
    %8 = vsyncpa [#allocation3], 0
    %9 = vsyncpa [#allocation6], 0
    %10 = vsyncpa [#allocation4], 0
    // Predicated region
    $region2: #{tpu_custom_call.1} parent=1 // pred_check
      _
    $region3: #{tpu_custom_call.1} parent=1 // pred_check_branch
      %12 = sbr.rel (0) target = $region5
    $region4: #{tpu_custom_call.1} parent=1 // pred_region
      %s14 = ssub.s32 128, 128
      %15 = vsyncadd [#allocation3], %s14
      %s17 = sshll.u32 [#allocation2], 4
      %s18 = int_to_ptr.vmem [resolvable:$true] %s17
      %20 = dma.hbm_to_vmem [thread:$0]  %s0, 128, %s18, [#allocation3]
    $region5: #{tpu_custom_call.1} parent=1 // pred_fallthru
      _
    // Predicated region
    $region6: #{tpu_custom_call.1} parent=1 // pred_check
      _
    $region7: #{tpu_custom_call.1} parent=1 // pred_check_branch
      %22 = sbr.rel (0) target = $region9
    $region8: #{tpu_custom_call.1} parent=1 // pred_region
      %s24 = ssub.s32 256, 256
      %25 = vsyncadd [#allocation6], %s24
      %s26 = sshll.u32 [#allocation5], 4
      %s27 = int_to_ptr.vmem [resolvable:$true] %s26
      %32 = dma.hbm_to_vmem [thread:$0]  %s1, 256, %s27, [#allocation6], 64, 64, 4
    $region9: #{tpu_custom_call.1} parent=1 // pred_fallthru
      _
    // Predicated region
    $region10: #{tpu_custom_call.1} parent=1 // pred_check
      _
    $region11: #{tpu_custom_call.1} parent=1 // pred_check_branch
      %34 = sbr.rel (0) target = $region13
    $region12: #{tpu_custom_call.1} parent=1 // pred_region
      _
    $region13: #{tpu_custom_call.1} parent=1 // pred_fallthru
      _
    // Predicated region
    $region14: #{tpu_custom_call.1} parent=1 // pred_check
      _
    $region15: #{tpu_custom_call.1} parent=1 // pred_check_branch
      %36 = sbr.rel (0) target = $region17
    $region16: #{tpu_custom_call.1} parent=1 // pred_region
      %37 = dma.done [#allocation3], 128
    $region17: #{tpu_custom_call.1} parent=1 // pred_fallthru
      _
    // Predicated region
    $region18: #{tpu_custom_call.1} parent=1 // pred_check
      _
    $region19: #{tpu_custom_call.1} parent=1 // pred_check_branch
      %39 = sbr.rel (0) target = $region21
    $region20: #{tpu_custom_call.1} parent=1 // pred_region
      %40 = dma.done [#allocation6], 256
    $region21: #{tpu_custom_call.1} parent=1 // pred_fallthru
      _
    %v42 = vld [vmem:[#allocation2] sm:$0xff]
    %v43 = vpack.c.bf16 %v42, %v42
    %v44 = vld [vmem:[#allocation5] sm:$0xf]
    %v45 = vld [vmem:[#allocation5 + $0x4] sm:$0xf]
    %v46 = vld [vmem:[#allocation5 + $0x8] sm:$0xf]
    %v47 = vld [vmem:[#allocation5 + $0xc] sm:$0xf]
    %v48 = vld [vmem:[%s2] sm:$0x1]
    %v50 = vlaneseq
    %v51 = vshrl.u32 %v50, 7
    %v52 = vsub.s32 0, %v51
    %v53 = vrot.slane %v48, %v52
    %v59 = vunpack.c.l.b16 %v44
    %v60 = vunpack.c.l.b16 %v45
    %v61 = vunpack.c.l.b16 %v46
    %v62 = vunpack.c.l.b16 %v47
    %v63 = vpack.c.b16 %v60, %v59
    %v64 = vpack.c.b16 %v62, %v61
    %vm67 = vcmask 261120
    %v69 = vsel %vm67, %v43, 0
    %71 = vmatprep.subr.bf16.mxu0 0
    %72 = vmatpush1.bf16.msra.mxu0 0
    %73 = vmatprep.subr.bf16.mxu0 0
    %74 = vmatpush1.bf16.msra.mxu0 0
    %75 = vmatprep.subr.bf16.mxu0 0
    %76 = vmatpush1.bf16.msra.mxu0 0
    %77 = vmatprep.subr.bf16.mxu0 0
    %78 = vmatpush1.bf16.msra.mxu0 0
    %79 = vmatprep.subr.bf16.mxu0 0
    %80 = vmatpush1.bf16.msra.mxu0 0
    %81 = vmatprep.subr.bf16.mxu0 0
    %82 = vmatpush1.bf16.msra.mxu0 0
    %83 = vmatprep.subr.bf16.mxu0 0
    %84 = vmatpush1.bf16.msra.mxu0 %v64
    %85 = vmatprep.subr.bf16.mxu0 0
    %86 = vmatpush1.bf16.msra.mxu0 %v63
    %87 = vmatprep.subr.bf16.mxu0 0
    %88 = vmatpush2.bf16.msra.mxu0 0
    %89 = vmatprep.subr.bf16.mxu0 0
    %90 = vmatpush2.bf16.msra.mxu0 0
    %91 = vmatprep.subr.bf16.mxu0 0
    %92 = vmatpush2.bf16.msra.mxu0 0
    %93 = vmatprep.subr.bf16.mxu0 0
    %94 = vmatpush2.bf16.msra.mxu0 0
    %95 = vmatprep.subr.bf16.mxu0 0
    %96 = vmatpush2.bf16.msra.mxu0 0
    %97 = vmatprep.subr.bf16.mxu0 0
    %98 = vmatpush2.bf16.msra.mxu0 0
    %99 = vmatprep.subr.bf16.mxu0 0
    %100 = vmatpush2.bf16.msra.mxu0 0
    %101 = vmatprep.subr.bf16.mxu0 0
    %102 = vmatpush2.bf16.msra.mxu0 0
    %103 = vmatprep.mubr.bf16.mxu0 0
    %104 = vmatmul.mubr.bf16.gmra.mxu0 %v69
    %v105 = vpop.f32.mrf.mxu0
    %v106 = vadd.f32 %v53, %v105
    %v107 = vpop.f32.mrf.mxu0
    %v108 = vpop.f32.mrf.mxu0
    %v109 = vpop.f32.mrf.mxu0
    %110 = vdwg.mxu0
    %v111 = vand.u32 2147483647, %v106
    %vm112 = vcmp.le.f32.partialorder %v111, 0.7853982
    %vm113 = vcmp.lt.s32.totalorder %v106, 0
    %v114 = vand.u32 %v106, 2139095040
    %v115 = vshrl.u32 %v114, 23
    %v116 = vsub.s32 %v115, 127
    %v117 = vand.u32 2147483647, %v106
    %v118 = vand.u32 %v117, 8388607
    %v119 = vor.u32 %v118, 8388608
    %v120 = vsub.s32 0, %v119
    %v121 = vadd.s32 %v116, 1
    %vm122 = vcmp.gt.s32.totalorder %v121, 0
    %v123 = vsel %vm122, %v121, 0
    %v124 = vshrl.u32 %v123, 5
    %v125 = vand.u32 %v123, 31
    %v126 = vsub.s32 32, %v125
    %v127 = vshrl.u32 683565275, %v126
    %v128 = vshll.u32 683565275, %v125
    %v129 = vshrl.u32 2475754826, %v126
    %v130 = vor.u32 %v128, %v129
    %v131 = vshll.u32 2475754826, %v125
    %v132 = vshrl.u32 2131351028, %v126
    %v133 = vor.u32 %v131, %v132
    %v134 = vshll.u32 2131351028, %v125
    %v135 = vshrl.u32 2102212464, %v126
    %v136 = vor.u32 %v134, %v135
    %v137 = vshll.u32 2102212464, %v125
    %v138 = vshrl.u32 920167782, %v126
    %v139 = vor.u32 %v137, %v138
    %v140 = vshll.u32 920167782, %v125
    %v141 = vshrl.u32 1326507024, %v126
    %v142 = vor.u32 %v140, %v141
    %vm143 = vcmp.lt.s32.totalorder %v124, 1
    %vm144 = vcmp.lt.s32.totalorder %v124, 2
    %vm145 = vcmp.lt.s32.totalorder %v124, 3
    %vm146 = vcmp.lt.s32.totalorder %v124, 4
    %v147 = vsel %vm143, %v127, %v130
    %v148 = vsel %vm146, %v136, 2102212464
    %v149 = vsel %vm145, %v133, %v148
    %v150 = vsel %vm144, %v147, %v149
    %v151 = vsel %vm143, %v130, %v133
    %v152 = vsel %vm146, %v139, 920167782
    %v153 = vsel %vm145, %v136, %v152
    %v154 = vsel %vm144, %v151, %v153
    %v155 = vsel %vm143, %v133, %v136
    %v156 = vsel %vm146, %v142, 1326507024
    %v157 = vsel %vm145, %v139, %v156
    %v158 = vsel %vm144, %v155, %v157
    %v159 = vshll.u32 %v119, 8
    %v160 = vmul.u32.u64.compose %v159, %v158
    %v161 = vextract.low.u32 %v160
    %v162 = vextract.high.u32 %v160
    %v163 = vmul.u32.u64.compose %v159, %v154
    %v164 = vextract.low.u32 %v163
    %v165 = vextract.high.u32 %v163
    %v166 = vmul.u32 %v159, %v150
    %v167 = vadd.s32 %v162, %v164
    %vm168 = vc.u32 %v162, %v164
    %v169 = vadd.s32 %v165, 1
    %v170 = vsel %vm168, %v169, %v165
    %v171 = vadd.s32 %v166, %v170
    %v172 = vadd.s32 %v171, 536870912
    %v173 = vshrl.u32 %v172, 30
    %v174 = vshll.u32 %v173, 30
    %v175 = vsub.s32 %v171, %v174
    %vm176 = vcmp.lt.s32.totalorder %v175, 0
    %v177 = vsub.s32 0, %v175
    %v178 = vsel %vm176, %v177, %v175
    %v179 = vclz %v178
    %v180 = vsub.s32 %v179, 2
    %vm181 = vcmp.gt.s32.totalorder 0, %v180
    %v182 = vsel %vm181, 0, %v180
    %v183 = vsub.s32 32, %v182
    %v184 = vshll.u32 %v175, %v182
    %v185 = vshrl.u32 %v167, %v183
    %v186 = vor.u32 %v184, %v185
    %v187 = vsub.s32 4294967266, %v182
    %v188 = vadd.s32 %v187, 127
    %v189 = vshll.u32 %v188, 23
    %v190 = vor.u32 4788187, %v189
    %v191 = vand.u32 2147483647, %v190
    %v193 = vcvt.s32.f32 %v186
    %v194 = vmul.f32 %v193, %v191
    %v195 = vxor.u32 %v194, 2147483648
    %v196 = vsel %vm113, %v195, %v194
    %v197 = vsub.s32 4, %v173
    %v198 = vsel %vm113, %v197, %v173
    %v199 = vsel %vm112, %v106, %v196
    %v200 = vsel %vm112, 0, %v198
    %v201 = vcosq.f32.pop %v199
    %v202 = vsinq.f32.pop %v199
    %vm203 = vweird.f32 %v106
    %v204 = vadd.s32 %v200, 3
    %v205 = vand.u32 %v204, 3
    %vm206 = vcmp.lt.s32.totalorder %v205, 2
    %vm207 = vcmp.eq.s32.totalorder %v205, 0
    %v208 = vxor.u32 %v202, 2147483648
    %v209 = vsel %vm207, %v201, %v208
    %vm210 = vcmp.eq.s32.totalorder %v205, 2
    %v211 = vxor.u32 %v201, 2147483648
    %v212 = vsel %vm210, %v211, %v202
    %v213 = vsel %vm206, %v209, %v212
    %v214 = vsel %vm203, nan, %v213
    %215 = vst [vmem:[#allocation7] sm:$0xff] %v214
    // Predicated region
    $region22: #{tpu_custom_call.1} parent=1 // pred_check
      _
    $region23: #{tpu_custom_call.1} parent=1 // pred_check_branch
      %217 = sbr.rel (0) target = $region25
    $region24: #{tpu_custom_call.1} parent=1 // pred_region
      %s219 = ssub.s32 128, 128
      %220 = vsyncadd [#allocation4], %s219
      %s222 = sshll.u32 [#allocation7], 4
      %s223 = int_to_ptr.vmem [resolvable:$true] %s222
      %225 = dma.vmem_to_hbm [thread:$0]  %s223, 128, %s3, [#allocation4]
    $region25: #{tpu_custom_call.1} parent=1 // pred_fallthru
      _
    // Predicated region
    $region26: #{tpu_custom_call.1} parent=1 // pred_check
      _
    $region27: #{tpu_custom_call.1} parent=1 // pred_check_branch
      %227 = sbr.rel (0) target = $region29
    $region28: #{tpu_custom_call.1} parent=1 // pred_region
      %228 = dma.done [#allocation4], 128
    $region29: #{tpu_custom_call.1} parent=1 // pred_fallthru
      _
    %229 = vsyncpa [#allocation3], 1
    %230 = vsyncpa [#allocation6], 1
    %231 = vsyncpa [#allocation4], 1

</llo_original>
